<compile_context>
chip_gen: v7x
topology: tpu7x:2x2x1
jax: 0.10.0
libtpu: 0.0.40
codegen_flags: <defaults>
</compile_context>

<pallas_src>
import functools

import jax
import jax.numpy as jnp
from jax.experimental import pallas as pl
from jax.experimental.pallas import tpu as pltpu

_MIB = 1 << 20


def _round_up(x, m):
    return ((x + m - 1) // m) * m


def _vmem_budget_bytes():
    """~75% of this generation's physical VMEM (headroom for Mosaic scratch)."""
    try:
        cap = int(pltpu.get_tpu_info().vmem_capacity_bytes)
    except Exception:
        cap = 64 * _MIB  # conservative default == v7x (smallest VMEM)
    return (cap * 3) // 4


# -----------------------------------------------------------------------------
# Fused single-pass kernel: one grid step processes a (tb, C, L) batch slab.
# -----------------------------------------------------------------------------
def _drs_fused_kernel(x_ref, w1t_ref, w2t_ref, o_ref, *, inv_len):
    x = x_ref[...]                                               # (tb, C, L)
    # AdaptiveAvgPool1d(1) over the TRUE length; f32 accumulation without a
    # full f32 copy of the block (padded tail is zeros -> contributes 0).
    abs_mean = jnp.sum(jnp.abs(x), axis=-1, dtype=jnp.float32) * inv_len  # (tb, C)
    # Gate: sigmoid(relu(abs_mean @ W1^T) @ W2^T); weights arrive transposed
    # and already f32 (hoisted to the wrapper).
    h = jnp.maximum(jnp.dot(abs_mean, w1t_ref[...],
                            preferred_element_type=jnp.float32), 0.0)     # (tb, H)
    y = jax.nn.sigmoid(jnp.dot(h, w2t_ref[...],
                               preferred_element_type=jnp.float32))       # (tb, C)
    thres = (abs_mean * y)[:, :, None]                                    # (tb, C, 1)
    # Soft threshold:  out = x - clip(x, -t, t)  ==  max(|x|-t, 0) * sign(x).
    # Done in f32 for parity with the f32 reference (identity cast for f32 x).
    xf = x.astype(jnp.float32)
    clipped = jnp.minimum(jnp.maximum(xf, -thres), thres)
    o_ref[...] = (xf - clipped).astype(o_ref.dtype)


def _fused_step_bytes(tb, C, Lp, itemsize):
    """Per-grid-step VMEM footprint of the fused kernel."""
    blk = tb * C * Lp
    # 2x double-buffered input + 2x double-buffered output + ~3 block-sized
    # f32 temps created in the body (|x|, f32 upcast, clipped).
    return 4 * blk * itemsize + 3 * blk * 4


def _pick_batch_tile(B, C, Lp, itemsize, budget, target=12 * _MIB, min_steps=4):
    per_b = _fused_step_bytes(1, C, Lp, itemsize)
    tb = max(1, min(target, budget) // per_b)
    # Keep at least min(B, min_steps) grid steps so the pipeline reaches steady
    # state and both v7x TensorCores get several steps each.
    tb = min(tb, max(1, pl.cdiv(B, min_steps)))
    return int(min(tb, B))


# -----------------------------------------------------------------------------
# Two-phase fallback for large C*L (a single (1, C, L) slab would not fit VMEM).
# Phase 1: L-tiled abs-mean accumulation + gate   -> thres (B, C)  [f32]
# Phase 2: L-tiled soft-threshold application     -> out   (B, C, L)
# -----------------------------------------------------------------------------
def _drs_reduce_gate_kernel(x_ref, w1t_ref, w2t_ref, thres_ref, acc_ref, *, inv_len):
    l = pl.program_id(1)

    @pl.when(l == 0)
    def _():
        acc_ref[...] = jnp.zeros_like(acc_ref)

    # (1, C, tl) -> (1, C) partial abs-sum, accumulated in f32 scratch.
    acc_ref[...] += jnp.sum(jnp.abs(x_ref[...]), axis=-1, dtype=jnp.float32)

    @pl.when(l == pl.num_programs(1) - 1)
    def _():
        abs_mean = acc_ref[...] * inv_len                         # (1, C)
        h = jnp.maximum(jnp.dot(abs_mean, w1t_ref[...],
                                preferred_element_type=jnp.float32), 0.0)
        y = jax.nn.sigmoid(jnp.dot(h, w2t_ref[...],
                                   preferred_element_type=jnp.float32))
        thres_ref[...] = abs_mean * y                             # (1, C)


def _drs_apply_kernel(x_ref, thres_ref, o_ref):
    x = x_ref[...].astype(jnp.float32)                            # (1, C, tl)
    t = thres_ref[...][:, :, None]                                # (1, C, 1)
    clipped = jnp.minimum(jnp.maximum(x, -t), t)
    o_ref[...] = (x - clipped).astype(o_ref.dtype)


# -----------------------------------------------------------------------------
# Wrapper
# -----------------------------------------------------------------------------
@functools.partial(jax.jit, static_argnames=("force_two_phase",))
def drs_layer2gm(x, w1, w2, *, force_two_phase=False):
    """x: (B, C, L); w1: (H, C); w2: (C, H)  (PyTorch Linear layout) -> (B, C, L)."""
    B, C, L = x.shape
    H = w1.shape[0]
    assert w1.shape == (H, C) and w2.shape == (C, H)

    itemsize = jnp.dtype(x.dtype).itemsize
    budget = _vmem_budget_bytes()

    # Hoist invariant work: transpose AND cast weights to f32 once in XLA.
    w1t = w1.T.astype(jnp.float32)   # (C, H)
    w2t = w2.T.astype(jnp.float32)   # (H, C)
    weight_bytes = 2 * (C * H + H * C) * 4    # double-buffered weight blocks

    inv_len = 1.0 / float(L)

    # Lane-dense output stores: pad L up to a multiple of 128 when the padding
    # overhead is small.  Padded zeros add 0 to the abs-sum and are sliced off.
    Lp = L
    if L % 128 != 0:
        cand = _round_up(L, 128)
        if cand - L <= max(L // 8, 0):
            Lp = cand

    fused_min = _fused_step_bytes(1, C, Lp, itemsize) + weight_bytes + 2 * _MIB
    use_two_phase = force_two_phase or (fused_min > budget)

    if not use_two_phase:
        tb = _pick_batch_tile(B, C, Lp, itemsize, budget)
        grid_b = pl.cdiv(B, tb)                # ragged final block is masked
        xin = x if Lp == L else jnp.pad(x, ((0, 0), (0, 0), (0, Lp - L)))
        needed = _fused_step_bytes(tb, C, Lp, itemsize) + weight_bytes + 2 * _MIB
        vmem_limit = int(min(max(needed, 32 * _MIB), budget))

        out = pl.pallas_call(
            functools.partial(_drs_fused_kernel, inv_len=inv_len),
            out_shape=jax.ShapeDtypeStruct((B, C, Lp), x.dtype),
            grid_spec=pltpu.PrefetchScalarGridSpec(
                num_scalar_prefetch=0,
                grid=(grid_b,),
                in_specs=[
                    pl.BlockSpec((tb, C, Lp), lambda b: (b, 0, 0)),
                    pl.BlockSpec((C, H), lambda b: (0, 0)),
                    pl.BlockSpec((H, C), lambda b: (0, 0)),
                ],
                out_specs=pl.BlockSpec((tb, C, Lp), lambda b: (b, 0, 0)),
            ),
            compiler_params=pltpu.CompilerParams(
                dimension_semantics=("parallel",),
                vmem_limit_bytes=vmem_limit,
            ),
            cost_estimate=pl.CostEstimate(
                flops=4 * B * C * H + 6 * B * C * L,
                transcendentals=B * C,
                bytes_accessed=2 * B * C * L * itemsize + (C * H + H * C) * 4,
            ),
        )(xin, w1t, w2t)
        return out if Lp == L else out[:, :, :L]

    # ---------------- two-phase fallback (L-tiled) ----------------
    per_l = 4 * C * itemsize + 2 * C * 4           # per L-column, worst phase
    tl = max(128, int((min(12 * _MIB, budget) // per_l) // 128) * 128)
    tl = min(tl, _round_up(L, 128))
    Lp2 = _round_up(L, tl)                          # tl divides Lp2 exactly
    nl = Lp2 // tl
    xin = x if Lp2 == L else jnp.pad(x, ((0, 0), (0, 0), (0, Lp2 - L)))

    step1 = C * tl * (2 * itemsize + 2 * 4) + weight_bytes + 2 * _MIB
    vmem1 = int(min(max(step1, 32 * _MIB), budget))
    thres = pl.pallas_call(
        functools.partial(_drs_reduce_gate_kernel, inv_len=inv_len),
        out_shape=jax.ShapeDtypeStruct((B, C), jnp.float32),
        grid_spec=pltpu.PrefetchScalarGridSpec(
            num_scalar_prefetch=0,
            grid=(B, nl),
            in_specs=[
                pl.BlockSpec((1, C, tl), lambda b, l: (b, 0, l)),
                pl.BlockSpec((C, H), lambda b, l: (0, 0)),
                pl.BlockSpec((H, C), lambda b, l: (0, 0)),
            ],
            out_specs=pl.BlockSpec((1, C), lambda b, l: (b, 0)),
            scratch_shapes=[pltpu.VMEM((1, C), jnp.float32)],
        ),
        compiler_params=pltpu.CompilerParams(
            dimension_semantics=("parallel", "arbitrary"),
            vmem_limit_bytes=vmem1,
        ),
        cost_estimate=pl.CostEstimate(
            flops=4 * B * C * H + 2 * B * C * L,
            transcendentals=B * C,
            bytes_accessed=B * C * L * itemsize + (C * H + H * C) * 4 + B * C * 4,
        ),
    )(xin, w1t, w2t)

    step2 = C * tl * (4 * itemsize + 2 * 4) + 2 * _MIB
    vmem2 = int(min(max(step2, 32 * _MIB), budget))
    out = pl.pallas_call(
        _drs_apply_kernel,
        out_shape=jax.ShapeDtypeStruct((B, C, Lp2), x.dtype),
        grid_spec=pltpu.PrefetchScalarGridSpec(
            num_scalar_prefetch=0,
            grid=(B, nl),
            in_specs=[
                pl.BlockSpec((1, C, tl), lambda b, l: (b, 0, l)),
                pl.BlockSpec((1, C), lambda b, l: (b, 0)),
            ],
            out_specs=pl.BlockSpec((1, C, tl), lambda b, l: (b, 0, l)),
        ),
        compiler_params=pltpu.CompilerParams(
            dimension_semantics=("parallel", "parallel"),
            vmem_limit_bytes=vmem2,
        ),
        cost_estimate=pl.CostEstimate(
            flops=4 * B * C * L,
            transcendentals=0,
            bytes_accessed=2 * B * C * L * itemsize + B * C * 4,
        ),
    )(xin, thres)
    return out if Lp2 == L else out[:, :, :L]


def _reference(x, w1, w2):
    """Pure-JAX reference mirroring the PyTorch forward."""
    abs_x = jnp.abs(x)
    abs_mean = jnp.mean(abs_x, axis=-1)                     # (B, C)
    h = jnp.maximum(abs_mean @ w1.T, 0.0)
    y = jax.nn.sigmoid(h @ w2.T)                            # (B, C)
    thres = (abs_mean * y)[:, :, None]
    d = jnp.maximum(abs_x - thres, 0.0)
    return d * jnp.sign(x)


if __name__ == "__main__":
    # Small shapes consistent with the module: x is (B, C, L); reduction=1 -> H=C.
    B, C, L = 2, 4, 16
    reduction = 1
    H = C // reduction

    key = jax.random.PRNGKey(0)
    kx, k1, k2 = jax.random.split(key, 3)
    x = jax.random.normal(kx, (B, C, L), dtype=jnp.float32)
    # Deterministic synthetic weights (stand-in for init_params(self.fc)).
    w1 = 0.1 * jax.random.normal(k1, (H, C), dtype=jnp.float32)   # Linear(C -> H)
    w2 = 0.1 * jax.random.normal(k2, (C, H), dtype=jnp.float32)   # Linear(H -> C)

    ref = _reference(x, w1, w2)

    # Primary fused path.
    out = jax.block_until_ready(drs_layer2gm(x, w1, w2))
    assert out.shape == (B, C, L)
    assert jnp.allclose(out, ref, atol=1e-5, rtol=1e-5), "fused path mismatch"

    # Exercise the large-C*L two-phase fallback path on the same data.
    out2 = jax.block_until_ready(drs_layer2gm(x, w1, w2, force_two_phase=True))
    assert out2.shape == (B, C, L)
    assert jnp.allclose(out2, ref, atol=1e-5, rtol=1e-5), "two-phase path mismatch"

    print("KERNEL_OK")
</pallas_src>

<mosaic_0001>
module attributes {stable_mosaic.version = 11 : i64} {
  func.func @_drs_fused_kernel(%arg0: i32, %arg1: memref<1x4x16xf32, #tpu.memory_space<vmem>>, %arg2: memref<4x4xf32, #tpu.memory_space<vmem>>, %arg3: memref<4x4xf32, #tpu.memory_space<vmem>>, %arg4: memref<1x4x16xf32, #tpu.memory_space<vmem>>) attributes {dimension_semantics = [#tpu.dimension_semantics<parallel>], iteration_bounds = array<i64: 2>, scalar_prefetch = 0 : i64, scratch_operands = 0 : i64, tpu.core_type = #tpu.core_type<tc>, window_params = [{transform_indices = @transform_0, window_bounds = array<i64: 1, 4, 16>}, {pipeline_mode = #tpu.pipeline_mode<synchronous>, transform_indices = @transform_1, window_bounds = array<i64: 4, 4>}, {pipeline_mode = #tpu.pipeline_mode<synchronous>, transform_indices = @transform_2, window_bounds = array<i64: 4, 4>}, {transform_indices = @transform_3, window_bounds = array<i64: 1, 4, 16>}]} {
    %c0 = arith.constant 0 : index
    %c0_0 = arith.constant 0 : index
    %c0_1 = arith.constant 0 : index
    %0 = vector.load %arg1[%c0, %c0_0, %c0_1] : memref<1x4x16xf32, #tpu.memory_space<vmem>>, vector<1x4x16xf32>
    %1 = math.absf %0 : vector<1x4x16xf32>
    %cst = arith.constant dense<0.000000e+00> : vector<1x4xf32>
    %2 = vector.multi_reduction <add>, %1, %cst [2] : vector<1x4x16xf32> to vector<1x4xf32>
    %cst_2 = arith.constant 6.250000e-02 : f32
    %3 = vector.broadcast %cst_2 : f32 to vector<1x4xf32>
    %4 = arith.mulf %2, %3 : vector<1x4xf32>
    %c0_3 = arith.constant 0 : index
    %c0_4 = arith.constant 0 : index
    %5 = vector.load %arg2[%c0_3, %c0_4] : memref<4x4xf32, #tpu.memory_space<vmem>>, vector<4x4xf32>
    %cst_5 = arith.constant dense<0.000000e+00> : vector<1x4xf32>
    %6 = tpu.matmul %4, %5, %cst_5 {dimension_numbers = #tpu.dot_dimension_numbers<[1], [0], [0], [1], [0, 0, 1, 1], [], []>} : vector<1x4xf32>, vector<4x4xf32>, vector<1x4xf32> -> vector<1x4xf32>
    %cst_6 = arith.constant 0.000000e+00 : f32
    %7 = vector.broadcast %cst_6 : f32 to vector<1x4xf32>
    %8 = arith.maximumf %6, %7 : vector<1x4xf32>
    %c0_7 = arith.constant 0 : index
    %c0_8 = arith.constant 0 : index
    %9 = vector.load %arg3[%c0_7, %c0_8] : memref<4x4xf32, #tpu.memory_space<vmem>>, vector<4x4xf32>
    %cst_9 = arith.constant dense<0.000000e+00> : vector<1x4xf32>
    %10 = tpu.matmul %8, %9, %cst_9 {dimension_numbers = #tpu.dot_dimension_numbers<[1], [0], [0], [1], [0, 0, 1, 1], [], []>} : vector<1x4xf32>, vector<4x4xf32>, vector<1x4xf32> -> vector<1x4xf32>
    %11 = arith.negf %10 : vector<1x4xf32>
    %12 = math.exp %11 : vector<1x4xf32>
    %cst_10 = arith.constant 1.000000e+00 : f32
    %13 = vector.broadcast %cst_10 : f32 to vector<1x4xf32>
    %14 = arith.addf %13, %12 : vector<1x4xf32>
    %15 = arith.divf %13, %14 : vector<1x4xf32>
    %16 = arith.mulf %4, %15 : vector<1x4xf32>
    %17 = vector.shape_cast %16 : vector<1x4xf32> to vector<1x4x1xf32>
    %cst_11 = arith.constant 0.000000e+00 : f32
    %18 = vector.broadcast %cst_11 : f32 to vector<1x4x1xf32>
    %19 = arith.subf %18, %17 : vector<1x4x1xf32>
    %20 = vector.broadcast %19 : vector<1x4x1xf32> to vector<1x4x16xf32>
    %21 = arith.maximumf %0, %20 : vector<1x4x16xf32>
    %22 = vector.broadcast %17 : vector<1x4x1xf32> to vector<1x4x16xf32>
    %23 = arith.minimumf %21, %22 : vector<1x4x16xf32>
    %24 = arith.subf %0, %23 : vector<1x4x16xf32>
    %c0_12 = arith.constant 0 : index
    %c0_13 = arith.constant 0 : index
    %c0_14 = arith.constant 0 : index
    %25 = vector.load %arg4[%c0_12, %c0_13, %c0_14] : memref<1x4x16xf32, #tpu.memory_space<vmem>>, vector<1x4x16xf32>
    tpu.vector_store %arg4[%c0_12, %c0_13, %c0_14], %24 {strides = array<i32>} : memref<1x4x16xf32, #tpu.memory_space<vmem>>, vector<1x4x16xf32>,
    return
  }
  func.func @transform_0(%arg0: i32) -> (i32, i32, i32) {
    %c0_i32 = arith.constant 0 : i32
    %c0_i32_0 = arith.constant 0 : i32
    %c0_i32_1 = arith.constant 0 : i32
    return %arg0, %c0_i32, %c0_i32_0 : i32, i32, i32
  }
  func.func @transform_1(%arg0: i32) -> (i32, i32) {
    %c0_i32 = arith.constant 0 : i32
    %c0_i32_0 = arith.constant 0 : i32
    %c0_i32_1 = arith.constant 0 : i32
    return %c0_i32, %c0_i32_0 : i32, i32
  }
  func.func @transform_2(%arg0: i32) -> (i32, i32) {
    %c0_i32 = arith.constant 0 : i32
    %c0_i32_0 = arith.constant 0 : i32
    %c0_i32_1 = arith.constant 0 : i32
    return %c0_i32, %c0_i32_0 : i32, i32
  }
  func.func @transform_3(%arg0: i32) -> (i32, i32, i32) {
    %c0_i32 = arith.constant 0 : i32
    %c0_i32_0 = arith.constant 0 : i32
    %c0_i32_1 = arith.constant 0 : i32
    return %arg0, %c0_i32, %c0_i32_0 : i32, i32, i32
  }
}

</mosaic_0001>

<llo_original>
// kernel: drs_layer2gm.1
$region0: #{drs_layer2gm.1}
  #allocation0 [shape = 'u32[]', space=smem, size = 0x4, offset = 0x4, fixed_abs, tag = 'smem constant byte address 0x4 - core index']
  #allocation1 [shape = 'u32[144,128]{1,0:T(1,128)}', space=vmem, size = 0x12000, scoped, tag = 'internal scratch']
  %s0 = inlined_call_operand.vmem [shape: f32[2,4,16], index: 0, kind: input, shape index: {}]
  %s1 = inlined_call_operand.vmem [shape: f32[4,4], index: 1, kind: input, shape index: {}]
  %s2 = inlined_call_operand.vmem [shape: f32[4,4], index: 2, kind: input, shape index: {}]
  %s3 = inlined_call_operand.hbm [shape: f32[2,4,16], index: 3, kind: output, shape index: {}]
  %s4 = sld [smem:[#allocation0]]
  $region45: #{drs_layer2gm.1} parent=0
    _
  %s6 = ssub.s32 1, %s4
  %s7 = scalar_select 0, %s6, %s4
  $region1: #{drs_layer2gm.1} parent=0
    #allocation2 [shape = 'u8[4096]{0}', space=vmem, size = 0x1000, scoped, tag = 'output window, operand 0']
    #allocation3 [shape = 's32[2]{0}', space=sflag, size = 0x8, scoped, tag = 'scoped memory for drs_layer2gm.1']
    %8 = vsyncpa [#allocation3], 0
    %s9 = scalar_lea.sflag [#allocation3], 1
    %10 = vsyncpa %s9, 0
    loop: start=0, step=1, limit=4
    $region2: #{drs_layer2gm.1} parent=1 // loop_pre_header
      _
    $region3: #{drs_layer2gm.1} parent=1 // loop_header
      %s12 = sphi 0, %s16
      %p13 = scmp.ge.s32.totalorder %s12, 4
      %s22 = sphi 0, %s24
      %s25 = sphi 0, %s22
      %s26 = sphi 0, %s25
      %s42 = sphi 0, %s26
      %s46 = sphi 0, %s46
      %s48 = sphi 0, %s46
      %s49 = sphi 0, %s48
      %s63 = sphi 0, %s49
      %s67 = sphi 0, %s67
      %s69 = sphi 0, %s67
      %s70 = sphi 0, %s69
      %s84 = sphi 0, %s70
      %s90 = sphi 0, %s92
      %s93 = sphi 0, %s90
      %s94 = sphi 0, %s93
      %s110 = sphi 0, %s94
    $region4: #{drs_layer2gm.1} parent=1 // loop_header_branch
      %15 = sbr.rel (%p13) target = $region8
    $region5: #{drs_layer2gm.1} parent=1 // loop_body
      %s17 = ssub.s32 %s12, 1
      %s18 = ssub.s32 %s12, 2
      %s19 = sadd.s32 %s12, 1
      %s20 = ssub.s32 %s12, %s19
      %p21 = scmp.eq.s32.totalorder %s20, 0
      %s23 = sadd.s32 %s22, 1
      %s24 = scalar_select %p21, %s22, %s23
      %p27 = pneg %p21
      %p28 = scmp.eq.s32.totalorder %s12, 1
      %p29 = por %p27, %p28
      %p30 = scmp.ne.s32.totalorder %s22, %s25
      %p31 = scmp.eq.s32.totalorder %s12, 0
      %p32 = por %p30, %p31
      %p33 = scmp.ne.s32.totalorder %s22, %s25
      %p34 = scmp.eq.s32.totalorder %s17, 1
      %p35 = por %p33, %p34
      %p36 = scmp.ne.s32.totalorder %s25, %s26
      %p37 = scmp.eq.s32.totalorder %s17, 0
      %p38 = por %p36, %p37
      %p39 = scmp.ne.s32.totalorder %s25, %s26
      %p40 = scmp.eq.s32.totalorder %s18, 1
      %p41 = por %p39, %p40
      %p43 = scmp.ne.s32.totalorder %s26, %s42
      %p44 = scmp.eq.s32.totalorder %s18, 0
      %p45 = por %p43, %p44
      %s47 = sadd.s32 %s46, 1
      %p50 = scmp.eq.s32.totalorder %s12, 1
      %p51 = scmp.ne.s32.totalorder %s46, %s48
      %p52 = scmp.eq.s32.totalorder %s12, 0
      %p53 = por %p51, %p52
      %p54 = scmp.ne.s32.totalorder %s46, %s48
      %p55 = scmp.eq.s32.totalorder %s17, 1
      %p56 = por %p54, %p55
      %p57 = scmp.ne.s32.totalorder %s48, %s49
      %p58 = scmp.eq.s32.totalorder %s17, 0
      %p59 = por %p57, %p58
      %p60 = scmp.ne.s32.totalorder %s48, %s49
      %p61 = scmp.eq.s32.totalorder %s18, 1
      %p62 = por %p60, %p61
      %p64 = scmp.ne.s32.totalorder %s49, %s63
      %p65 = scmp.eq.s32.totalorder %s18, 0
      %p66 = por %p64, %p65
      %s68 = sadd.s32 %s67, 1
      %p71 = scmp.eq.s32.totalorder %s12, 1
      %p72 = scmp.ne.s32.totalorder %s67, %s69
      %p73 = scmp.eq.s32.totalorder %s12, 0
      %p74 = por %p72, %p73
      %p75 = scmp.ne.s32.totalorder %s67, %s69
      %p76 = scmp.eq.s32.totalorder %s17, 1
      %p77 = por %p75, %p76
      %p78 = scmp.ne.s32.totalorder %s69, %s70
      %p79 = scmp.eq.s32.totalorder %s17, 0
      %p80 = por %p78, %p79
      %p81 = scmp.ne.s32.totalorder %s69, %s70
      %p82 = scmp.eq.s32.totalorder %s18, 1
      %p83 = por %p81, %p82
      %p85 = scmp.ne.s32.totalorder %s70, %s84
      %p86 = scmp.eq.s32.totalorder %s18, 0
      %p87 = por %p85, %p86
      %s88 = ssub.s32 %s12, %s19
      %p89 = scmp.eq.s32.totalorder %s88, 0
      %s91 = sadd.s32 %s90, 1
      %s92 = scalar_select %p89, %s90, %s91
      %p95 = pneg %p89
      %p96 = scmp.eq.s32.totalorder %s12, 1
      %p97 = por %p95, %p96
      %p98 = scmp.ne.s32.totalorder %s90, %s93
      %p99 = scmp.eq.s32.totalorder %s12, 0
      %p100 = por %p98, %p99
      %p101 = scmp.ne.s32.totalorder %s90, %s93
      %p102 = scmp.eq.s32.totalorder %s17, 1
      %p103 = por %p101, %p102
      %p104 = scmp.ne.s32.totalorder %s93, %s94
      %p105 = scmp.eq.s32.totalorder %s17, 0
      %p106 = por %p104, %p105
      %p107 = scmp.ne.s32.totalorder %s93, %s94
      %p108 = scmp.eq.s32.totalorder %s18, 1
      %p109 = por %p107, %p108
      %p111 = scmp.ne.s32.totalorder %s94, %s110
      %p112 = scmp.eq.s32.totalorder %s18, 0
      %p113 = por %p111, %p112
      %p114 = scmp.le.s32.totalorder 1, %s12
      %p115 = scmp.lt.s32.totalorder %s12, 3
      %p116 = pnand %p114, %p115
      %p117 = pneg %p116
      // Predicated region
      $region9: #{drs_layer2gm.1} parent=5 // pred_check
        _
      $region10: #{drs_layer2gm.1} parent=5 // pred_check_branch
        %119 = sbr.rel (%p116) target = $region12
      $region11: #{drs_layer2gm.1} parent=5 // pred_region
        %s120 = ssub.s32 %s12, 1
        // Predicated region
        $region13: #{drs_layer2gm.1} parent=11 // pred_check
          %p121 = pneg %p59
        $region14: #{drs_layer2gm.1} parent=11 // pred_check_branch
          %123 = sbr.rel (%p121) target = $region16
        $region15: #{drs_layer2gm.1} parent=11 // pred_region
          _
        $region16: #{drs_layer2gm.1} parent=11 // pred_fallthru
          _
        // Predicated region
        $region17: #{drs_layer2gm.1} parent=11 // pred_check
          %p124 = pneg %p80
        $region18: #{drs_layer2gm.1} parent=11 // pred_check_branch
          %126 = sbr.rel (%p124) target = $region20
        $region19: #{drs_layer2gm.1} parent=11 // pred_region
          _
        $region20: #{drs_layer2gm.1} parent=11 // pred_fallthru
          _
      $region12: #{drs_layer2gm.1} parent=5 // pred_fallthru
        _
      %p127 = scmp.lt.s32.totalorder %s12, 2
      // Predicated region
      $region21: #{drs_layer2gm.1} parent=5 // pred_check
        %p128 = pneg %p127
      $region22: #{drs_layer2gm.1} parent=5 // pred_check_branch
        %130 = sbr.rel (%p128) target = $region24
      $region23: #{drs_layer2gm.1} parent=5 // pred_region
        // Predicated region
        $region25: #{drs_layer2gm.1} parent=23 // pred_check
          %p131 = pneg %p32
        $region26: #{drs_layer2gm.1} parent=23 // pred_check_branch
          %133 = sbr.rel (%p131) target = $region28
        $region27: #{drs_layer2gm.1} parent=23 // pred_region
          %p134 = scmp.lt.s32.totalorder %s12, 1
          %s135 = scalar_select %p134, %s12, 1
          %s136 = smul.addr %s135, 4
          %s137 = scalar_lea.vmem %s0, %s136
        $region28: #{drs_layer2gm.1} parent=23 // pred_fallthru
          _
      $region24: #{drs_layer2gm.1} parent=5 // pred_fallthru
        _
      %p138 = scmp.le.s32.totalorder 1, %s12
      %p139 = scmp.lt.s32.totalorder %s12, 3
      %p140 = pnand %p138, %p139
      %p141 = pneg %p140
      // Predicated region
      $region29: #{drs_layer2gm.1} parent=5 // pred_check
        _
      $region30: #{drs_layer2gm.1} parent=5 // pred_check_branch
        %143 = sbr.rel (%p140) target = $region32
      $region31: #{drs_layer2gm.1} parent=5 // pred_region
        %s144 = ssub.s32 %s12, 1
        %p145 = scmp.lt.s32.totalorder %s17, 1
        %s146 = scalar_select %p145, %s17, 1
        %s147 = smul.addr %s146, 4
        %s148 = scalar_lea.vmem %s0, %s147
        %p149 = pneg %p38
        %p150 = pneg %p35
        %p151 = pneg %p59
        %p152 = pneg %p56
        %p153 = pneg %p80
        %p154 = pneg %p77
        %p155 = pneg %p106
        %p156 = pneg %p103
        %s157 = sand.u32 %s93, 1
        %s158 = scalar_lea.sflag [#allocation3], %s157
        %s159 = sand.u32 %s93, 1
        %s160 = smul.addr %s159, 4
        %s161 = scalar_lea.vmem [#allocation2], %s160
        %p162 = scmp.lt.s32.totalorder %s17, 1
        %s163 = scalar_select %p162, %s17, 1
        %s164 = smul.addr %s163, 4
        %s165 = scalar_lea.vmem %s0, %s164
        %v166 = vld [vmem:[%s165] sm:$0xf]
        %v167 = vand.u32 2147483647, %v166
        %vm168 = vcmask 125952
        %v169 = vsel %vm168, %v167, 0.0
        %170 = vadd.xlane.f32.xlu0 %v169
        %v171 = vpop.xlane.xlu0 %170
        %v172 = vmul.f32 %v171, 0.0625
        %v173 = vld [vmem:[%s1] sm:$0xf]
        %v175 = vlaneseq
        %v176 = vand.u32 %v175, 127
        %v177 = vlaneseq
        %v178 = vshrl.u32 %v177, 7
        %v179 = vsub.s32 %v176, %v178
        %v180 = vrot.slane %v172, %v179
        %vm181 = vcmask 31744
        %v182 = vsel %vm181, %v180, 0
        %vm184 = vcmask 1043456
        %v186 = vsel %vm184, %v173, 0
        %188 = vmatprep.subr.mxu0 0.0
        %189 = vmatpush1.msra.mxu0 %v186
        %190 = vmatprep.subr.mxu0 0.0
        %191 = vmatpush1.msra.mxu0 0.0
        %192 = vmatprep.subr.mxu0 0.0
        %193 = vmatpush1.msra.mxu0 0.0
        %194 = vmatprep.subr.mxu0 0.0
        %195 = vmatpush1.msra.mxu0 0.0
        %196 = vmatprep.subr.mxu0 0.0
        %197 = vmatpush1.msra.mxu0 0.0
        %198 = vmatprep.subr.mxu0 0.0
        %199 = vmatpush1.msra.mxu0 0.0
        %200 = vmatprep.subr.mxu0 0.0
        %201 = vmatpush1.msra.mxu0 0.0
        %202 = vmatprep.subr.mxu0 0.0
        %203 = vmatpush1.msra.mxu0 0.0
        %204 = vmatprep.subr.mxu0 0.0
        %205 = vmatpush1.msra.mxu0 0.0
        %206 = vmatprep.subr.mxu0 0.0
        %207 = vmatpush1.msra.mxu0 0.0
        %208 = vmatprep.subr.mxu0 0.0
        %209 = vmatpush1.msra.mxu0 0.0
        %210 = vmatprep.subr.mxu0 0.0
        %211 = vmatpush1.msra.mxu0 0.0
        %212 = vmatprep.subr.mxu0 0.0
        %213 = vmatpush1.msra.mxu0 0.0
        %214 = vmatprep.subr.mxu0 0.0
        %215 = vmatpush1.msra.mxu0 0.0
        %216 = vmatprep.subr.mxu0 0.0
        %217 = vmatpush1.msra.mxu0 0.0
        %218 = vmatprep.subr.mxu0 0.0
        %219 = vmatpush1.msra.mxu0 0.0
        %220 = vmatprep.subr.mxu0 0.0
        %221 = vmatpush1.msra.mxu0 0.0
        %222 = vmatprep.subr.mxu0 0.0
        %223 = vmatpush1.msra.mxu0 0.0
        %224 = vmatprep.subr.mxu0 0.0
        %225 = vmatpush1.msra.mxu0 0.0
        %226 = vmatprep.subr.mxu0 0.0
        %227 = vmatpush1.msra.mxu0 0.0
        %228 = vmatprep.subr.mxu0 0.0
        %229 = vmatpush1.msra.mxu0 0.0
        %230 = vmatprep.subr.mxu0 0.0
        %231 = vmatpush1.msra.mxu0 0.0
        %232 = vmatprep.subr.mxu0 0.0
        %233 = vmatpush1.msra.mxu0 0.0
        %234 = vmatprep.subr.mxu0 0.0
        %235 = vmatpush1.msra.mxu0 0.0
        %236 = vmatprep.subr.mxu0 0.0
        %237 = vmatpush1.msra.mxu0 0.0
        %238 = vmatprep.subr.mxu0 0.0
        %239 = vmatpush1.msra.mxu0 0.0
        %240 = vmatprep.subr.mxu0 0.0
        %241 = vmatpush1.msra.mxu0 0.0
        %242 = vmatprep.subr.mxu0 0.0
        %243 = vmatpush1.msra.mxu0 0.0
        %244 = vmatprep.subr.mxu0 0.0
        %245 = vmatpush1.msra.mxu0 0.0
        %246 = vmatprep.subr.mxu0 0.0
        %247 = vmatpush1.msra.mxu0 0.0
        %248 = vmatprep.subr.mxu0 0.0
        %249 = vmatpush1.msra.mxu0 0.0
        %250 = vmatprep.subr.mxu0 0.0
        %251 = vmatpush1.msra.mxu0 0.0
        %252 = vmatprep.mubr.f32.mxu0 0.0
        %253 = vmatmul.mubr.f32.gmra.mrb[0].mxu0 %v182
        %v254 = vpop.f32.mrb[0].mxu0
        %v255 = vadd.f32 0.0, %v254
        %v256 = vpop.f32.mrb[0].mxu0
        %257 = vdwg.mxu0
        %v258 = vmax.f32 %v255, 0.0
        %v259 = vld [vmem:[%s2] sm:$0xf]
        %v261 = vsel %vm181, %v258, 0
        %v264 = vsel %vm184, %v259, 0
        %266 = vmatprep.subr.mxu0 0.0
        %267 = vmatpush1.msra.mxu0 %v264
        %268 = vmatprep.subr.mxu0 0.0
        %269 = vmatpush1.msra.mxu0 0.0
        %270 = vmatprep.subr.mxu0 0.0
        %271 = vmatpush1.msra.mxu0 0.0
        %272 = vmatprep.subr.mxu0 0.0
        %273 = vmatpush1.msra.mxu0 0.0
        %274 = vmatprep.subr.mxu0 0.0
        %275 = vmatpush1.msra.mxu0 0.0
        %276 = vmatprep.subr.mxu0 0.0
        %277 = vmatpush1.msra.mxu0 0.0
        %278 = vmatprep.subr.mxu0 0.0
        %279 = vmatpush1.msra.mxu0 0.0
        %280 = vmatprep.subr.mxu0 0.0
        %281 = vmatpush1.msra.mxu0 0.0
        %282 = vmatprep.subr.mxu0 0.0
        %283 = vmatpush1.msra.mxu0 0.0
        %284 = vmatprep.subr.mxu0 0.0
        %285 = vmatpush1.msra.mxu0 0.0
        %286 = vmatprep.subr.mxu0 0.0
        %287 = vmatpush1.msra.mxu0 0.0
        %288 = vmatprep.subr.mxu0 0.0
        %289 = vmatpush1.msra.mxu0 0.0
        %290 = vmatprep.subr.mxu0 0.0
        %291 = vmatpush1.msra.mxu0 0.0
        %292 = vmatprep.subr.mxu0 0.0
        %293 = vmatpush1.msra.mxu0 0.0
        %294 = vmatprep.subr.mxu0 0.0
        %295 = vmatpush1.msra.mxu0 0.0
        %296 = vmatprep.subr.mxu0 0.0
        %297 = vmatpush1.msra.mxu0 0.0
        %298 = vmatprep.subr.mxu0 0.0
        %299 = vmatpush1.msra.mxu0 0.0
        %300 = vmatprep.subr.mxu0 0.0
        %301 = vmatpush1.msra.mxu0 0.0
        %302 = vmatprep.subr.mxu0 0.0
        %303 = vmatpush1.msra.mxu0 0.0
        %304 = vmatprep.subr.mxu0 0.0
        %305 = vmatpush1.msra.mxu0 0.0
        %306 = vmatprep.subr.mxu0 0.0
        %307 = vmatpush1.msra.mxu0 0.0
        %308 = vmatprep.subr.mxu0 0.0
        %309 = vmatpush1.msra.mxu0 0.0
        %310 = vmatprep.subr.mxu0 0.0
        %311 = vmatpush1.msra.mxu0 0.0
        %312 = vmatprep.subr.mxu0 0.0
        %313 = vmatpush1.msra.mxu0 0.0
        %314 = vmatprep.subr.mxu0 0.0
        %315 = vmatpush1.msra.mxu0 0.0
        %316 = vmatprep.subr.mxu0 0.0
        %317 = vmatpush1.msra.mxu0 0.0
        %318 = vmatprep.subr.mxu0 0.0
        %319 = vmatpush1.msra.mxu0 0.0
        %320 = vmatprep.subr.mxu0 0.0
        %321 = vmatpush1.msra.mxu0 0.0
        %322 = vmatprep.subr.mxu0 0.0
        %323 = vmatpush1.msra.mxu0 0.0
        %324 = vmatprep.subr.mxu0 0.0
        %325 = vmatpush1.msra.mxu0 0.0
        %326 = vmatprep.subr.mxu0 0.0
        %327 = vmatpush1.msra.mxu0 0.0
        %328 = vmatprep.subr.mxu0 0.0
        %329 = vmatpush1.msra.mxu0 0.0
        %330 = vmatprep.mubr.f32.mxu0 0.0
        %331 = vmatmul.mubr.f32.gmra.mrb[0].mxu0 %v261
        %v332 = vpop.f32.mrb[0].mxu0
        %v333 = vadd.f32 0.0, %v332
        %v334 = vpop.f32.mrb[0].mxu0
        %335 = vdwg.mxu0
        %v336 = vxor.u32 %v333, 2147483648
        %v337 = vmul.f32 %v336, 1.442695
        %v338 = vpow.pop %v337
        %v339 = vadd.f32 %v338, 1.0
        %v340 = vrcp.pop %v339
        %v341 = vmul.f32 1.0, %v340
        %v343 = vlaneseq
        %v344 = vshrl.u32 %v343, 7
        %v345 = vsub.s32 0, %v344
        %v346 = vrot.slane %v341, %v345
        %348 = vbcast.lane.b32.xlu0 %v346, 256
        %v349 = vpop.permute.xlu0 %348
        %v351 = vmul.f32 %v172, %v349
        %v352 = vsub.f32 0.0, %v351
        %354 = vset.pattern.permute.xlu0 0
        %355 = vperm.xlu0 %354, %v352
        %v356 = vpop.permute.xlu0 %355
        %v358 = vmax.f32 %v166, %v356
        %360 = vset.pattern.permute.xlu0 0
        %361 = vperm.xlu0 %360, %v351
        %v362 = vpop.permute.xlu0 %361
        %v364 = vmin.f32 %v358, %v362
        %v365 = vsub.f32 %v166, %v364
        %366 = vst.msk [vmem:[%s161] sm:$0xf] %vm168, %v365
        %s367 = sand.u32 %s93, 1
        %s368 = scalar_lea.sflag [#allocation3], %s367
        %s369 = sand.u32 %s93, 1
        %s370 = smul.addr %s369, 4
        %s371 = scalar_lea.vmem [#allocation2], %s370
        // Predicated region
        $region33: #{drs_layer2gm.1} parent=31 // pred_check
          %p372 = pneg %p103
        $region34: #{drs_layer2gm.1} parent=31 // pred_check_branch
          %374 = sbr.rel (%p372) target = $region36
        $region35: #{drs_layer2gm.1} parent=31 // pred_region
          %s376 = ssub.s32 64, 64
          %377 = vsyncadd %s368, %s376
          %s378 = smul.addr %s17, 64
          %s379 = scalar_lea.hbm %s3, %s378
          %s381 = sshll.u32 %s371, 4
          %s382 = int_to_ptr.vmem [resolvable:$true] %s381
          %384 = dma.vmem_to_hbm [thread:$0]  %s382, 64, %s379, %s368
        $region36: #{drs_layer2gm.1} parent=31 // pred_fallthru
          _
      $region32: #{drs_layer2gm.1} parent=5 // pred_fallthru
        _
      %p385 = scmp.le.s32.totalorder 2, %s12
      // Predicated region
      $region37: #{drs_layer2gm.1} parent=5 // pred_check
        %p386 = pneg %p385
      $region38: #{drs_layer2gm.1} parent=5 // pred_check_branch
        %388 = sbr.rel (%p386) target = $region40
      $region39: #{drs_layer2gm.1} parent=5 // pred_region
        %s389 = ssub.s32 %s12, 2
        // Predicated region
        $region41: #{drs_layer2gm.1} parent=39 // pred_check
          %p390 = pneg %p109
        $region42: #{drs_layer2gm.1} parent=39 // pred_check_branch
          %392 = sbr.rel (%p390) target = $region44
        $region43: #{drs_layer2gm.1} parent=39 // pred_region
          %s393 = sand.u32 %s94, 1
          %s394 = scalar_lea.sflag [#allocation3], %s393
          %s395 = sand.u32 %s94, 1
          %s396 = smul.addr %s395, 4
          %s397 = scalar_lea.vmem [#allocation2], %s396
          %398 = dma.done %s394, 64
        $region44: #{drs_layer2gm.1} parent=39 // pred_fallthru
          _
      $region40: #{drs_layer2gm.1} parent=5 // pred_fallthru
        _
    $region6: #{drs_layer2gm.1} parent=1 // loop_footer
      %s16 = sadd.s32 1, %s12
    $region7: #{drs_layer2gm.1} parent=1 // loop_footer_branch
      %11 = sbr.rel target = $region3
    $region8: #{drs_layer2gm.1} parent=1 // loop_exit
      _
    %399 = vsyncpa [#allocation3], 1
    %s400 = scalar_lea.sflag [#allocation3], 1
    %401 = vsyncpa %s400, 1

</llo_original>
